<compile_context>
chip_gen: v5e
topology: v5e:2x2
jax: 0.10.0
libtpu: 0.0.40
codegen_flags: <defaults>
</compile_context>

<pallas_src>
import math

import jax
import jax.numpy as jnp
from jax.experimental import pallas as pl
from jax.experimental.pallas import tpu as pltpu

LANE = 128
SUBLANE = 8
MAX_TILE_ROWS = 2048  # (2048, 128) f32 = 1 MiB per input per block


def _make_kernel(tile_rows: int, n_valid: int, needs_mask: bool):
    groups = tile_rows // SUBLANE

    def kernel(pred_ref, targ_ref, out_ref):
        x = pred_ref[...].astype(jnp.float32)
        t = targ_ref[...].astype(jnp.float32)

        # Shared exp(-|x|) for both the stable BCE-with-logits term and sigmoid.
        e = jnp.exp(-jnp.abs(x))
        softplus = jnp.log1p(e)                       # log(1 + exp(-|x|))
        bce = jnp.maximum(x, 0.0) - x * t + softplus  # matches BCEWithLogitsLoss
        p = jnp.where(x >= 0.0, 1.0, e) / (1.0 + e)   # sigmoid(x), one divide
        pt = p * t

        if needs_mask:
            # Zero out the padded / out-of-bounds tail (only compiled in when
            # the flattened size is not an exact multiple of the tiling).
            i = pl.program_id(0)
            row = jax.lax.broadcasted_iota(jnp.int32, (tile_rows, LANE), 0)
            lane = jax.lax.broadcasted_iota(jnp.int32, (tile_rows, LANE), 1)
            elem = (i * tile_rows + row) * LANE + lane
            valid = elem < n_valid
            zero = jnp.float32(0.0)
            bce = jnp.where(valid, bce, zero)
            p = jnp.where(valid, p, zero)
            t = jnp.where(valid, t, zero)
            pt = jnp.where(valid, pt, zero)

        def partial(v):
            # (tile_rows, 128) -> (groups, 8, 128) -> sum over groups:
            # pure elementwise vreg adds (VPU), no per-step cross-lane XLU work.
            return jnp.sum(v.reshape(groups, SUBLANE, LANE), axis=0)

        out_ref[0, 0] = partial(bce)  # sum of per-element BCE
        out_ref[0, 1] = partial(p)    # sum of sigmoid(pred)
        out_ref[0, 2] = partial(t)    # sum of targets
        out_ref[0, 3] = partial(pt)   # sum of sigmoid(pred) * targets

    return kernel


def combined_loss(predictions, targets, smooth: float = 1.0):
    """0.5 * BCEWithLogitsLoss(pred, targ) + 0.5 * DiceLoss(sigmoid(pred), targ)."""
    assert predictions.shape == targets.shape
    n = int(math.prod(predictions.shape))

    pred_flat = predictions.reshape(-1)   # native dtype, no upcast in wrapper
    targ_flat = targets.reshape(-1)

    chunk = SUBLANE * LANE  # 1024
    padded = -(-n // chunk) * chunk
    if padded != n:
        # Only pay the pad copy for ragged sizes; exact multiples skip it.
        pred_flat = jnp.pad(pred_flat, (0, padded - n))
        targ_flat = jnp.pad(targ_flat, (0, padded - n))

    rows = padded // LANE
    pred2 = pred_flat.reshape(rows, LANE)
    targ2 = targ_flat.reshape(rows, LANE)

    tile_rows = min(MAX_TILE_ROWS, rows)          # multiple of 8 by construction
    num_blocks = -(-rows // tile_rows)
    needs_mask = (padded != n) or (rows % tile_rows != 0)

    in_spec = pl.BlockSpec((tile_rows, LANE), lambda i: (i, 0))
    out_spec = pl.BlockSpec((1, 4, SUBLANE, LANE), lambda i: (i, 0, 0, 0))

    partials = pl.pallas_call(
        _make_kernel(tile_rows, n, needs_mask),
        out_shape=jax.ShapeDtypeStruct((num_blocks, 4, SUBLANE, LANE), jnp.float32),
        grid_spec=pltpu.PrefetchScalarGridSpec(
            num_scalar_prefetch=0,
            grid=(num_blocks,),
            in_specs=[in_spec, in_spec],
            out_specs=out_spec,
        ),
        compiler_params=pltpu.CompilerParams(
            dimension_semantics=("parallel",),
        ),
    )(pred2, targ2)

    # Tiny final reduction + scalar combine in plain JAX (once, not per step).
    sums = jnp.sum(partials.astype(jnp.float32), axis=(0, 2, 3))  # (4,)
    bce_loss = sums[0] / n
    dice_loss = 1.0 - (2.0 * sums[3] + smooth) / (sums[1] + sums[2] + smooth)
    return 0.5 * bce_loss + 0.5 * dice_loss


def combined_loss_ref(predictions, targets, smooth: float = 1.0):
    """Pure-JAX reference matching the PyTorch module."""
    x = predictions.astype(jnp.float32)
    t = targets.astype(jnp.float32)
    bce = jnp.mean(jnp.maximum(x, 0.0) - x * t + jnp.log1p(jnp.exp(-jnp.abs(x))))
    p = jax.nn.sigmoid(x).reshape(-1)
    tf = t.reshape(-1)
    inter = jnp.sum(p * tf)
    dice = 1.0 - (2.0 * inter + smooth) / (jnp.sum(p) + jnp.sum(tf) + smooth)
    return 0.5 * bce + 0.5 * dice


if __name__ == "__main__":
    key = jax.random.PRNGKey(0)
    k1, k2, k3, k4 = jax.random.split(key, 4)

    # Test 1: f32 NCHW logits / binary targets, size divisible by 1024
    #         (fast path: no padding, no in-kernel mask).
    predictions = jax.random.normal(k1, (2, 4, 16, 16), dtype=jnp.float32)
    targets = (jax.random.uniform(k2, (2, 4, 16, 16)) > 0.5).astype(jnp.float32)
    loss = jax.block_until_ready(combined_loss(predictions, targets, smooth=1.0))
    ref = combined_loss_ref(predictions, targets, smooth=1.0)
    assert jnp.allclose(loss, ref, atol=1e-5, rtol=1e-5), (loss, ref)

    # Test 2: ragged size -> exercises tail padding + in-kernel validity mask.
    preds2 = jax.random.normal(k3, (2, 3, 15, 17), dtype=jnp.float32)
    targs2 = (jax.random.uniform(k4, (2, 3, 15, 17)) > 0.5).astype(jnp.float32)
    loss2 = jax.block_until_ready(combined_loss(preds2, targs2, smooth=1.0))
    ref2 = combined_loss_ref(preds2, targs2, smooth=1.0)
    assert jnp.allclose(loss2, ref2, atol=1e-5, rtol=1e-5), (loss2, ref2)

    # Test 3: bf16 logits streamed natively, cast to f32 inside the kernel.
    preds3 = predictions.astype(jnp.bfloat16)
    loss3 = jax.block_until_ready(combined_loss(preds3, targets, smooth=1.0))
    ref3 = combined_loss_ref(preds3, targets, smooth=1.0)
    assert jnp.allclose(loss3, ref3, atol=1e-4, rtol=1e-4), (loss3, ref3)

    print("KERNEL_OK")
</pallas_src>

<mosaic_0001>
module attributes {stable_mosaic.version = 11 : i64} {
  func.func @kernel(%arg0: i32, %arg1: memref<16x128xf32, #tpu.memory_space<vmem>>, %arg2: memref<16x128xf32, #tpu.memory_space<vmem>>, %arg3: memref<1x4x8x128xf32, #tpu.memory_space<vmem>>) attributes {dimension_semantics = [#tpu.dimension_semantics<parallel>], iteration_bounds = array<i64: 1>, scalar_prefetch = 0 : i64, scratch_operands = 0 : i64, tpu.core_type = #tpu.core_type<tc>, window_params = [{transform_indices = @transform_0, window_bounds = array<i64: 16, 128>}, {transform_indices = @transform_1, window_bounds = array<i64: 16, 128>}, {transform_indices = @transform_2, window_bounds = array<i64: 1, 4, 8, 128>}]} {
    %c0 = arith.constant 0 : index
    %c0_0 = arith.constant 0 : index
    %0 = vector.load %arg1[%c0, %c0_0] : memref<16x128xf32, #tpu.memory_space<vmem>>, vector<16x128xf32>
    %c0_1 = arith.constant 0 : index
    %c0_2 = arith.constant 0 : index
    %1 = vector.load %arg2[%c0_1, %c0_2] : memref<16x128xf32, #tpu.memory_space<vmem>>, vector<16x128xf32>
    %2 = math.absf %0 : vector<16x128xf32>
    %cst = arith.constant 0.000000e+00 : f32
    %3 = vector.broadcast %cst : f32 to vector<16x128xf32>
    %4 = arith.subf %3, %2 : vector<16x128xf32>
    %5 = math.exp %4 : vector<16x128xf32>
    %6 = math.log1p %5 : vector<16x128xf32>
    %cst_3 = arith.constant 0.000000e+00 : f32
    %7 = vector.broadcast %cst_3 : f32 to vector<16x128xf32>
    %8 = arith.maximumf %0, %7 : vector<16x128xf32>
    %9 = arith.mulf %0, %1 : vector<16x128xf32>
    %10 = arith.subf %8, %9 : vector<16x128xf32>
    %11 = arith.addf %10, %6 : vector<16x128xf32>
    %cst_4 = arith.constant 0.000000e+00 : f32
    %12 = vector.broadcast %cst_4 : f32 to vector<16x128xf32>
    %13 = arith.cmpf oge, %0, %12 : vector<16x128xf32>
    %cst_5 = arith.constant 1.000000e+00 : f32
    %14 = vector.broadcast %cst_5 : f32 to vector<16x128xf32>
    %15 = arith.select %13, %14, %5 : vector<16x128xi1>, vector<16x128xf32>
    %cst_6 = arith.constant 1.000000e+00 : f32
    %16 = vector.broadcast %cst_6 : f32 to vector<16x128xf32>
    %17 = arith.addf %16, %5 : vector<16x128xf32>
    %18 = arith.divf %15, %17 : vector<16x128xf32>
    %19 = arith.mulf %18, %1 : vector<16x128xf32>
    %20 = vector.shape_cast %11 : vector<16x128xf32> to vector<2x8x128xf32>
    %cst_7 = arith.constant dense<0.000000e+00> : vector<8x128xf32>
    %21 = vector.multi_reduction <add>, %20, %cst_7 [0] : vector<2x8x128xf32> to vector<8x128xf32>
    %c0_8 = arith.constant 0 : index
    %c0_9 = arith.constant 0 : index
    %c0_10 = arith.constant 0 : index
    %c0_11 = arith.constant 0 : index
    %22 = vector.load %arg3[%c0_8, %c0_9, %c0_10, %c0_11] : memref<1x4x8x128xf32, #tpu.memory_space<vmem>>, vector<1x1x8x128xf32>
    %23 = vector.shape_cast %22 : vector<1x1x8x128xf32> to vector<8x128xf32>
    %24 = vector.shape_cast %21 : vector<8x128xf32> to vector<1x1x8x128xf32>
    tpu.vector_store %arg3[%c0_8, %c0_9, %c0_10, %c0_11], %24 {strides = array<i32>} : memref<1x4x8x128xf32, #tpu.memory_space<vmem>>, vector<1x1x8x128xf32>,
    %25 = vector.shape_cast %18 : vector<16x128xf32> to vector<2x8x128xf32>
    %cst_12 = arith.constant dense<0.000000e+00> : vector<8x128xf32>
    %26 = vector.multi_reduction <add>, %25, %cst_12 [0] : vector<2x8x128xf32> to vector<8x128xf32>
    %c0_13 = arith.constant 0 : index
    %c1 = arith.constant 1 : index
    %c0_14 = arith.constant 0 : index
    %c0_15 = arith.constant 0 : index
    %27 = vector.load %arg3[%c0_13, %c1, %c0_14, %c0_15] : memref<1x4x8x128xf32, #tpu.memory_space<vmem>>, vector<1x1x8x128xf32>
    %28 = vector.shape_cast %27 : vector<1x1x8x128xf32> to vector<8x128xf32>
    %29 = vector.shape_cast %26 : vector<8x128xf32> to vector<1x1x8x128xf32>
    tpu.vector_store %arg3[%c0_13, %c1, %c0_14, %c0_15], %29 {strides = array<i32>} : memref<1x4x8x128xf32, #tpu.memory_space<vmem>>, vector<1x1x8x128xf32>,
    %30 = vector.shape_cast %1 : vector<16x128xf32> to vector<2x8x128xf32>
    %cst_16 = arith.constant dense<0.000000e+00> : vector<8x128xf32>
    %31 = vector.multi_reduction <add>, %30, %cst_16 [0] : vector<2x8x128xf32> to vector<8x128xf32>
    %c0_17 = arith.constant 0 : index
    %c2 = arith.constant 2 : index
    %c0_18 = arith.constant 0 : index
    %c0_19 = arith.constant 0 : index
    %32 = vector.load %arg3[%c0_17, %c2, %c0_18, %c0_19] : memref<1x4x8x128xf32, #tpu.memory_space<vmem>>, vector<1x1x8x128xf32>
    %33 = vector.shape_cast %32 : vector<1x1x8x128xf32> to vector<8x128xf32>
    %34 = vector.shape_cast %31 : vector<8x128xf32> to vector<1x1x8x128xf32>
    tpu.vector_store %arg3[%c0_17, %c2, %c0_18, %c0_19], %34 {strides = array<i32>} : memref<1x4x8x128xf32, #tpu.memory_space<vmem>>, vector<1x1x8x128xf32>,
    %35 = vector.shape_cast %19 : vector<16x128xf32> to vector<2x8x128xf32>
    %cst_20 = arith.constant dense<0.000000e+00> : vector<8x128xf32>
    %36 = vector.multi_reduction <add>, %35, %cst_20 [0] : vector<2x8x128xf32> to vector<8x128xf32>
    %c0_21 = arith.constant 0 : index
    %c3 = arith.constant 3 : index
    %c0_22 = arith.constant 0 : index
    %c0_23 = arith.constant 0 : index
    %37 = vector.load %arg3[%c0_21, %c3, %c0_22, %c0_23] : memref<1x4x8x128xf32, #tpu.memory_space<vmem>>, vector<1x1x8x128xf32>
    %38 = vector.shape_cast %37 : vector<1x1x8x128xf32> to vector<8x128xf32>
    %39 = vector.shape_cast %36 : vector<8x128xf32> to vector<1x1x8x128xf32>
    tpu.vector_store %arg3[%c0_21, %c3, %c0_22, %c0_23], %39 {strides = array<i32>} : memref<1x4x8x128xf32, #tpu.memory_space<vmem>>, vector<1x1x8x128xf32>,
    return
  }
  func.func @transform_0(%arg0: i32) -> (i32, i32) {
    %c0_i32 = arith.constant 0 : i32
    %c0_i32_0 = arith.constant 0 : i32
    return %arg0, %c0_i32 : i32, i32
  }
  func.func @transform_1(%arg0: i32) -> (i32, i32) {
    %c0_i32 = arith.constant 0 : i32
    %c0_i32_0 = arith.constant 0 : i32
    return %arg0, %c0_i32 : i32, i32
  }
  func.func @transform_2(%arg0: i32) -> (i32, i32, i32, i32) {
    %c0_i32 = arith.constant 0 : i32
    %c0_i32_0 = arith.constant 0 : i32
    %c0_i32_1 = arith.constant 0 : i32
    %c0_i32_2 = arith.constant 0 : i32
    return %arg0, %c0_i32, %c0_i32_0, %c0_i32_1 : i32, i32, i32, i32
  }
}

</mosaic_0001>

<llo_original>
// kernel: tpu_custom_call.1
$region0: #{tpu_custom_call.1}
  #allocation0 [shape = 'u32[]', space=smem, size = 0x4, offset = 0x4, fixed_abs, tag = 'smem constant byte address 0x4 - core index']
  #allocation1 [shape = 'u32[72,128]{1,0:T(1,128)}', space=vmem, size = 0x9000, scoped, tag = 'internal scratch']
  %s0 = inlined_call_operand.hbm [shape: f32[16,128], index: 0, kind: input, shape index: {}]
  %s1 = inlined_call_operand.hbm [shape: f32[16,128], index: 1, kind: input, shape index: {}]
  %s2 = inlined_call_operand.hbm [shape: f32[1,4,8,128], index: 2, kind: output, shape index: {}]
  %s3 = sld [smem:[#allocation0]]
  $region26: #{tpu_custom_call.1} parent=0
    _
  %s5 = ssub.s32 1, %s3
  %s6 = scalar_select 0, %s5, %s3
  $region1: #{tpu_custom_call.1} parent=0
    #allocation2 [shape = 'u8[8192]{0}', space=vmem, size = 0x2000, scoped, tag = 'input window, operand 0, single buffered']
    #allocation3 [shape = 's32[1]{0}', space=sflag, size = 0x4, scoped, tag = 'scoped memory for tpu_custom_call.1']
    #allocation4 [shape = 's32[1]{0}', space=sflag, size = 0x4, scoped, tag = 'scoped memory for tpu_custom_call.1']
    #allocation5 [shape = 'u8[8192]{0}', space=vmem, size = 0x2000, scoped, tag = 'input window, operand 1, single buffered']
    #allocation6 [shape = 's32[1]{0}', space=sflag, size = 0x4, scoped, tag = 'scoped memory for tpu_custom_call.1']
    #allocation7 [shape = 'u8[16384]{0}', space=vmem, size = 0x4000, scoped, tag = 'output window, operand 0, single buffered']
    %7 = vsyncpa [#allocation3], 0
    %8 = vsyncpa [#allocation6], 0
    %9 = vsyncpa [#allocation4], 0
    // Predicated region
    $region2: #{tpu_custom_call.1} parent=1 // pred_check
      _
    $region3: #{tpu_custom_call.1} parent=1 // pred_check_branch
      %11 = sbr.rel (0) target = $region5
    $region4: #{tpu_custom_call.1} parent=1 // pred_region
      %13 = vsyncadd [#allocation3], 0
      %s14 = sshll.u32 %s0, 4
      %s15 = int_to_ptr.hbm [resolvable:$true] %s14
      %s16 = sshll.u32 [#allocation2], 4
      %s17 = int_to_ptr.vmem [resolvable:$true] %s16
      %22 = dma.hbm_to_vmem [thread:$0]  %s15, 256, %s17, [#allocation3], 128, 128, 8
    $region5: #{tpu_custom_call.1} parent=1 // pred_fallthru
      _
    // Predicated region
    $region6: #{tpu_custom_call.1} parent=1 // pred_check
      _
    $region7: #{tpu_custom_call.1} parent=1 // pred_check_branch
      %24 = sbr.rel (0) target = $region9
    $region8: #{tpu_custom_call.1} parent=1 // pred_region
      %26 = vsyncadd [#allocation6], 0
      %s27 = sshll.u32 %s1, 4
      %s28 = int_to_ptr.hbm [resolvable:$true] %s27
      %s29 = sshll.u32 [#allocation5], 4
      %s30 = int_to_ptr.vmem [resolvable:$true] %s29
      %35 = dma.hbm_to_vmem [thread:$0]  %s28, 256, %s30, [#allocation6], 128, 128, 8
    $region9: #{tpu_custom_call.1} parent=1 // pred_fallthru
      _
    // Predicated region
    $region10: #{tpu_custom_call.1} parent=1 // pred_check
      _
    $region11: #{tpu_custom_call.1} parent=1 // pred_check_branch
      %37 = sbr.rel (0) target = $region13
    $region12: #{tpu_custom_call.1} parent=1 // pred_region
      %39 = dma.done [#allocation3], 256
    $region13: #{tpu_custom_call.1} parent=1 // pred_fallthru
      _
    // Predicated region
    $region14: #{tpu_custom_call.1} parent=1 // pred_check
      _
    $region15: #{tpu_custom_call.1} parent=1 // pred_check_branch
      %41 = sbr.rel (0) target = $region17
    $region16: #{tpu_custom_call.1} parent=1 // pred_region
      %43 = dma.done [#allocation6], 256
    $region17: #{tpu_custom_call.1} parent=1 // pred_fallthru
      _
    %v44 = vld [vmem:[#allocation2] sm:$0xff]
    %v45 = vld [vmem:[#allocation2 + $0x8] sm:$0xff]
    %v46 = vld [vmem:[#allocation5] sm:$0xff]
    %v47 = vld [vmem:[#allocation5 + $0x8] sm:$0xff]
    %v48 = vand.u32 2147483647, %v44
    %v49 = vand.u32 2147483647, %v45
    %v50 = vsub.f32 0.0, %v48
    %v51 = vsub.f32 0.0, %v49
    %v52 = vmul.f32 %v50, 1.442695
    %v53 = vpow.pop %v52
    %v54 = vmul.f32 %v51, 1.442695
    %v55 = vpow.pop %v54
    %v56 = vadd.f32 %v53, 1.0
    %v57 = vlog2.pop %v56
    %v58 = vmul.f32 %v57, 0.6931472
    %v59 = vmul.f32 -0.5, %v53
    %v60 = vadd.f32 %v59, 1.0
    %v61 = vmul.f32 %v60, %v53
    %v62 = vand.u32 2147483647, %v53
    %vm63 = vcmp.lt.f32.partialorder %v62, 0.0004427343
    %v64 = vsel %vm63, %v61, %v58
    %v65 = vadd.f32 %v55, 1.0
    %v66 = vlog2.pop %v65
    %v67 = vmul.f32 %v66, 0.6931472
    %v68 = vmul.f32 -0.5, %v55
    %v69 = vadd.f32 %v68, 1.0
    %v70 = vmul.f32 %v69, %v55
    %v71 = vand.u32 2147483647, %v55
    %vm72 = vcmp.lt.f32.partialorder %v71, 0.0004427343
    %v73 = vsel %vm72, %v70, %v67
    %v74 = vmax.f32 %v44, 0.0
    %v75 = vmax.f32 %v45, 0.0
    %v76 = vmul.f32 %v44, %v46
    %v77 = vmul.f32 %v45, %v47
    %v78 = vsub.f32 %v74, %v76
    %v79 = vsub.f32 %v75, %v77
    %v80 = vadd.f32 %v78, %v64
    %v81 = vadd.f32 %v79, %v73
    %vm82 = vcmp.ge.f32.partialorder %v44, 0.0
    %vm83 = vcmp.ge.f32.partialorder %v45, 0.0
    %v84 = vsel %vm82, 1.0, %v53
    %v85 = vsel %vm83, 1.0, %v55
    %v86 = vadd.f32 %v53, 1.0
    %v87 = vadd.f32 %v55, 1.0
    %v88 = vrcp.pop %v86
    %v89 = vmul.f32 %v86, %v88
    %v90 = vsub.f32 1.0, %v89
    %v91 = vmul.f32 %v88, %v90
    %v92 = vadd.f32 %v88, %v91
    %vm93 = vweird.f32 %v86
    %vm94 = vweird.f32 %v88
    %vm95 = vmor %vm93, %vm94
    %v96 = vsel %vm95, %v88, %v92
    %v97 = vand.u32 2147483647, %v86
    %vm98 = vcmp.eq.f32.partialorder %v97, 8.507059e+37
    %v99 = vand.u32 %v86, 2147483648
    %v100 = vor.u32 1.1754944e-38, %v99
    %v101 = vsel %vm98, %v100, %v96
    %v102 = vmul.f32 %v84, %v101
    %v103 = vrcp.pop %v87
    %v104 = vmul.f32 %v87, %v103
    %v105 = vsub.f32 1.0, %v104
    %v106 = vmul.f32 %v103, %v105
    %v107 = vadd.f32 %v103, %v106
    %vm108 = vweird.f32 %v87
    %vm109 = vweird.f32 %v103
    %vm110 = vmor %vm108, %vm109
    %v111 = vsel %vm110, %v103, %v107
    %v112 = vand.u32 2147483647, %v87
    %vm113 = vcmp.eq.f32.partialorder %v112, 8.507059e+37
    %v114 = vand.u32 %v87, 2147483648
    %v115 = vor.u32 1.1754944e-38, %v114
    %v116 = vsel %vm113, %v115, %v111
    %v117 = vmul.f32 %v85, %v116
    %v118 = vmul.f32 %v102, %v46
    %v119 = vmul.f32 %v117, %v47
    %v120 = vadd.f32 %v80, %v81
    %121 = vst [vmem:[#allocation7] sm:$0xff] %v120
    %v122 = vadd.f32 %v102, %v117
    %s123 = scalar_lea.vmem [#allocation7], 8
    %124 = vst [vmem:[%s123] sm:$0xff] %v122
    %v125 = vadd.f32 %v46, %v47
    %s126 = scalar_lea.vmem [#allocation7], 16
    %127 = vst [vmem:[%s126] sm:$0xff] %v125
    %v128 = vadd.f32 %v118, %v119
    %s129 = scalar_lea.vmem [#allocation7], 24
    %130 = vst [vmem:[%s129] sm:$0xff] %v128
    // Predicated region
    $region18: #{tpu_custom_call.1} parent=1 // pred_check
      _
    $region19: #{tpu_custom_call.1} parent=1 // pred_check_branch
      %132 = sbr.rel (0) target = $region21
    $region20: #{tpu_custom_call.1} parent=1 // pred_region
      %134 = vsyncadd [#allocation4], 0
      %s135 = sshll.u32 [#allocation7], 4
      %s136 = int_to_ptr.vmem [resolvable:$true] %s135
      %s137 = sshll.u32 %s2, 4
      %s138 = int_to_ptr.hbm [resolvable:$true] %s137
      %143 = dma.vmem_to_hbm [thread:$0]  %s136, 512, %s138, [#allocation4], 128, 128, 8
    $region21: #{tpu_custom_call.1} parent=1 // pred_fallthru
      _
    // Predicated region
    $region22: #{tpu_custom_call.1} parent=1 // pred_check
      _
    $region23: #{tpu_custom_call.1} parent=1 // pred_check_branch
      %145 = sbr.rel (0) target = $region25
    $region24: #{tpu_custom_call.1} parent=1 // pred_region
      %147 = dma.done [#allocation4], 512
    $region25: #{tpu_custom_call.1} parent=1 // pred_fallthru
      _
    %148 = vsyncpa [#allocation3], 1
    %149 = vsyncpa [#allocation6], 1
    %150 = vsyncpa [#allocation4], 1

</llo_original>
